<compile_context>
chip_gen: v5e
topology: v5e:2x2
jax: 0.10.0
libtpu: 0.0.40
codegen_flags: <defaults>
</compile_context>

<pallas_src>
import jax
import jax.numpy as jnp
from jax.experimental import pallas as pl
from jax.experimental.pallas import tpu as pltpu

_MiB = 1024 * 1024
_DEFAULT_BLOCK_BUDGET = 2 * _MiB   # keeps 2x(x+out)+noise under v5e's 16 MiB scoped VMEM
_MIN_GRID_STEPS = 8                # enough steps for 2 TCs (v7x) + pipeline overlap


def _round_up(x, m):
    return (x + m - 1) // m * m


def _sublane_multiple(itemsize):
    # sub-32-bit dtypes pack along sublanes: f32 -> 8, bf16 -> 16, int8/fp8 -> 32
    return {4: 8, 2: 16, 1: 32}.get(itemsize, 8)


def _pick_tiles(n, c, hw, itemsize, max_block_bytes, min_grid_steps=_MIN_GRID_STEPS):
    """Choose (channel_tile, lane_tile, n_c, n_hw, padded_tc) for (1, C, HW) blocks.

    Budgets with the sublane-padded channel count so the real VMEM footprint
    (not the logical one) stays under max_block_bytes per block."""
    sub = _sublane_multiple(itemsize)
    padded_c_full = _round_up(c, sub)

    # Channel tile: keep all channels together (noise fetched once per lane
    # tile) unless even a 128-lane block would blow the budget.
    if c <= sub or padded_c_full * 128 * itemsize <= max_block_bytes:
        tc = c                      # full extent -> always a legal block dim
        padded_tc = padded_c_full
    else:
        tc = max(sub, (max_block_bytes // (128 * itemsize)) // sub * sub)
        tc = min(tc, padded_c_full)
        padded_tc = tc
    n_c = pl.cdiv(c, tc)

    # Lane tile: multiple of 128 (or the full extent when HW <= 128), sized by
    # the VMEM budget and capped so there are enough grid steps for two
    # TensorCores plus double-buffering. cdiv grid -> masked last block.
    if hw <= 128:
        t = hw
    else:
        t_budget = max(128, (max_block_bytes // max(1, padded_tc * itemsize)) // 128 * 128)
        n_hw_want = max(1, -(-min_grid_steps // max(1, n * n_c)))
        t_steps = max(128, (hw // n_hw_want) // 128 * 128)
        t = min(t_budget, t_steps)
    n_hw = pl.cdiv(hw, t)
    return tc, t, n_c, n_hw, padded_tc


def _vmem_limit_bytes(block_bytes_sum):
    # 2x for double-buffering plus headroom; never below the smallest scoped
    # default (16 MiB, v5e) and capped at ~48 MiB for v7x's 64 MiB physical VMEM.
    return int(min(48 * _MiB, max(16 * _MiB, 2 * block_bytes_sum + 4 * _MiB)))


# ---------------------------------------------------------------- add variant
def _add_noise_kernel(x_ref, noise_ref, std_ref, o_ref):
    # x_ref: (1, TC, T); noise_ref: (1, 1, T); std_ref: (1, TC, 1)
    o_ref[...] = (x_ref[...] + std_ref[...] * noise_ref[...]).astype(o_ref.dtype)


def add_noise_add(x, noise, std, *, max_block_bytes=_DEFAULT_BLOCK_BUDGET):
    """cat=False path: out = x + std[c] * noise, noise broadcast over channels."""
    N, C, H, W = x.shape
    chan = std.shape[0]
    assert chan in (1, C), "std channels must be 1 or match x channels"
    HW = H * W
    itemsize = x.dtype.itemsize
    sub = _sublane_multiple(itemsize)

    # Lane-dense flattened views.
    x3 = x.reshape(N, C, HW)
    n3 = noise.reshape(N, 1, HW)
    std3 = jnp.broadcast_to(std.reshape(chan, 1), (C, 1)).reshape(1, C, 1)
    std3 = std3.astype(jnp.promote_types(std.dtype, x.dtype))

    tc, t, n_c, n_hw, padded_tc = _pick_tiles(N, C, HW, itemsize, max_block_bytes)

    block_bytes = (2 * padded_tc * t          # x + out
                   + sub * t                  # noise plane
                   + padded_tc * 128) * itemsize  # std (lane-padded)
    cost = pl.CostEstimate(flops=2 * N * C * HW, transcendentals=0,
                           bytes_accessed=(2 * C + 1) * N * HW * itemsize)

    out = pl.pallas_call(
        _add_noise_kernel,
        out_shape=jax.ShapeDtypeStruct((N, C, HW), x.dtype),
        grid=(N, n_hw, n_c),
        in_specs=[
            pl.BlockSpec((1, tc, t), lambda n, j, c: (n, c, j)),
            pl.BlockSpec((1, 1, t), lambda n, j, c: (n, 0, j)),   # const over c -> no re-DMA
            pl.BlockSpec((1, tc, 1), lambda n, j, c: (0, c, 0)),
        ],
        out_specs=pl.BlockSpec((1, tc, t), lambda n, j, c: (n, c, j)),
        compiler_params=pltpu.CompilerParams(
            dimension_semantics=("parallel", "parallel", "parallel"),
            vmem_limit_bytes=_vmem_limit_bytes(block_bytes)),
        cost_estimate=cost,
    )(x3, n3, std3)
    return out.reshape(N, C, H, W)


# ---------------------------------------------------------------- cat variant
def _cat_noise_kernel(x_ref, noise_ref, o_ref):
    C = x_ref.shape[1]
    o_ref[:, 0:C, :] = x_ref[...]
    o_ref[:, C:C + 1, :] = noise_ref[...]


def add_noise_cat(x, noise, *, max_block_bytes=_DEFAULT_BLOCK_BUDGET):
    """cat=True path: concatenate noise as an extra channel (pure data movement)."""
    N, C, H, W = x.shape
    HW = H * W
    itemsize = x.dtype.itemsize
    sub = _sublane_multiple(itemsize)
    padded_co = _round_up(C + 1, sub)

    x3 = x.reshape(N, C, HW)
    n3 = noise.reshape(N, 1, HW).astype(x.dtype)

    # Lane-axis tiling only: the channel axis stays whole so the concat split
    # is a static in-kernel slice (C+1 equals the full output dim -> legal block).
    if HW <= 128:
        t = HW
    else:
        t_budget = max(128, (max_block_bytes // max(1, padded_co * itemsize)) // 128 * 128)
        n_hw_want = max(1, -(-_MIN_GRID_STEPS // max(1, N)))
        t_steps = max(128, (HW // n_hw_want) // 128 * 128)
        t = min(t_budget, t_steps)
    n_hw = pl.cdiv(HW, t)

    block_bytes = (_round_up(C, sub) + sub + padded_co) * t * itemsize
    cost = pl.CostEstimate(flops=0, transcendentals=0,
                           bytes_accessed=(2 * C + 2) * N * HW * itemsize)

    out = pl.pallas_call(
        _cat_noise_kernel,
        out_shape=jax.ShapeDtypeStruct((N, C + 1, HW), x.dtype),
        grid=(N, n_hw),
        in_specs=[
            pl.BlockSpec((1, C, t), lambda n, j: (n, 0, j)),
            pl.BlockSpec((1, 1, t), lambda n, j: (n, 0, j)),
        ],
        out_specs=pl.BlockSpec((1, C + 1, t), lambda n, j: (n, 0, j)),
        compiler_params=pltpu.CompilerParams(
            dimension_semantics=("parallel", "parallel"),
            vmem_limit_bytes=_vmem_limit_bytes(block_bytes)),
        cost_estimate=cost,
    )(x3, n3)
    return out.reshape(N, C + 1, H, W)


# -------------------------------------------------------------------- wrapper
def add_noise_forward(x, noise, *, cat, std=None):
    if cat:
        return add_noise_cat(x, noise)
    return add_noise_add(x, noise, std)


def _reference(x, noise, *, cat, std=None):
    if cat:
        return jnp.concatenate([x, noise.astype(x.dtype)], axis=1)
    std_shape = (-1,) + (1,) * (x.ndim - 2)
    return x + std.reshape(std_shape) * noise


if __name__ == "__main__":
    key = jax.random.PRNGKey(0)
    kx, kn, ks, kx2, kn2, kx3, kn3, ks3 = jax.random.split(key, 8)

    N, C, H, W = 2, 4, 16, 16
    x = jax.random.normal(kx, (N, C, H, W), dtype=jnp.float32)
    # noise = randn_like(x[:, :1]) in the PyTorch module
    noise = jax.random.normal(kn, (N, 1, H, W), dtype=jnp.float32)

    # --- cat=False, chan=1 (StyleGAN2), std initialized to zeros as in __init__
    std1 = jnp.zeros((1,), dtype=jnp.float32)
    out_add = jax.block_until_ready(add_noise_forward(x, noise, cat=False, std=std1))
    ref_add = _reference(x, noise, cat=False, std=std1)
    assert out_add.shape == (N, C, H, W)
    assert jnp.allclose(out_add, ref_add, atol=1e-6)

    # --- cat=False, chan=C (StyleGAN), nonzero std to exercise broadcasting
    stdC = jax.random.normal(ks, (C,), dtype=jnp.float32)
    out_addC = jax.block_until_ready(add_noise_forward(x, noise, cat=False, std=stdC))
    ref_addC = _reference(x, noise, cat=False, std=stdC)
    assert out_addC.shape == (N, C, H, W)
    assert jnp.allclose(out_addC, ref_addC, atol=1e-5)

    # --- cat=True
    out_cat = jax.block_until_ready(add_noise_forward(x, noise, cat=True))
    ref_cat = _reference(x, noise, cat=True)
    assert out_cat.shape == (N, C + 1, H, W)
    assert jnp.allclose(out_cat, ref_cat, atol=1e-6)

    # --- HW not a multiple of 128: exercises the cdiv grid / masked last lane block
    Hn, Wn = 12, 12
    x_nd = jax.random.normal(kx2, (N, C, Hn, Wn), dtype=jnp.float32)
    noise_nd = jax.random.normal(kn2, (N, 1, Hn, Wn), dtype=jnp.float32)
    out_nd = jax.block_until_ready(add_noise_forward(x_nd, noise_nd, cat=False, std=stdC))
    ref_nd = _reference(x_nd, noise_nd, cat=False, std=stdC)
    assert jnp.allclose(out_nd, ref_nd, atol=1e-5)
    out_nd_cat = jax.block_until_ready(add_noise_forward(x_nd, noise_nd, cat=True))
    assert jnp.allclose(out_nd_cat, _reference(x_nd, noise_nd, cat=True), atol=1e-6)

    # --- Force the channel-tiling path (tiny block budget, C=20 -> 3 C-tiles of 8,
    #     last one masked) to validate it end-to-end
    Cc = 20
    x_c = jax.random.normal(kx3, (N, Cc, 16, 16), dtype=jnp.float32)
    noise_c = jax.random.normal(kn3, (N, 1, 16, 16), dtype=jnp.float32)
    std_c = jax.random.normal(ks3, (Cc,), dtype=jnp.float32)
    out_c = jax.block_until_ready(
        add_noise_add(x_c, noise_c, std_c, max_block_bytes=4096))
    ref_c = _reference(x_c, noise_c, cat=False, std=std_c)
    assert jnp.allclose(out_c, ref_c, atol=1e-5)

    print("KERNEL_OK")
</pallas_src>

<mosaic_0001>
module attributes {stable_mosaic.version = 11 : i64} {
  func.func @_add_noise_kernel(%arg0: i32, %arg1: i32, %arg2: i32, %arg3: memref<1x4x128xf32, #tpu.memory_space<vmem>>, %arg4: memref<1x1x128xf32, #tpu.memory_space<vmem>>, %arg5: memref<1x4x1xf32, #tpu.memory_space<vmem>>, %arg6: memref<1x4x128xf32, #tpu.memory_space<vmem>>) attributes {dimension_semantics = [#tpu.dimension_semantics<parallel>, #tpu.dimension_semantics<parallel>, #tpu.dimension_semantics<parallel>], iteration_bounds = array<i64: 2, 2, 1>, scalar_prefetch = 0 : i64, scratch_operands = 0 : i64, tpu.core_type = #tpu.core_type<tc>, window_params = [{transform_indices = @transform_0, window_bounds = array<i64: 1, 4, 128>}, {transform_indices = @transform_1, window_bounds = array<i64: 1, 1, 128>}, {transform_indices = @transform_2, window_bounds = array<i64: 1, 4, 1>}, {transform_indices = @transform_3, window_bounds = array<i64: 1, 4, 128>}]} {
    %c0 = arith.constant 0 : index
    %c0_0 = arith.constant 0 : index
    %c0_1 = arith.constant 0 : index
    %0 = vector.load %arg3[%c0, %c0_0, %c0_1] : memref<1x4x128xf32, #tpu.memory_space<vmem>>, vector<1x4x128xf32>
    %c0_2 = arith.constant 0 : index
    %c0_3 = arith.constant 0 : index
    %c0_4 = arith.constant 0 : index
    %1 = vector.load %arg5[%c0_2, %c0_3, %c0_4] : memref<1x4x1xf32, #tpu.memory_space<vmem>>, vector<1x4x1xf32>
    %c0_5 = arith.constant 0 : index
    %c0_6 = arith.constant 0 : index
    %c0_7 = arith.constant 0 : index
    %2 = vector.load %arg4[%c0_5, %c0_6, %c0_7] : memref<1x1x128xf32, #tpu.memory_space<vmem>>, vector<1x1x128xf32>
    %3 = vector.broadcast %1 : vector<1x4x1xf32> to vector<1x4x128xf32>
    %4 = vector.broadcast %2 : vector<1x1x128xf32> to vector<1x4x128xf32>
    %5 = arith.mulf %3, %4 : vector<1x4x128xf32>
    %6 = arith.addf %0, %5 : vector<1x4x128xf32>
    %c0_8 = arith.constant 0 : index
    %c0_9 = arith.constant 0 : index
    %c0_10 = arith.constant 0 : index
    %7 = vector.load %arg6[%c0_8, %c0_9, %c0_10] : memref<1x4x128xf32, #tpu.memory_space<vmem>>, vector<1x4x128xf32>
    tpu.vector_store %arg6[%c0_8, %c0_9, %c0_10], %6 {strides = array<i32>} : memref<1x4x128xf32, #tpu.memory_space<vmem>>, vector<1x4x128xf32>,
    return
  }
  func.func @transform_0(%arg0: i32, %arg1: i32, %arg2: i32) -> (i32, i32, i32) {
    %c0_i32 = arith.constant 0 : i32
    return %arg0, %arg2, %arg1 : i32, i32, i32
  }
  func.func @transform_1(%arg0: i32, %arg1: i32, %arg2: i32) -> (i32, i32, i32) {
    %c0_i32 = arith.constant 0 : i32
    %c0_i32_0 = arith.constant 0 : i32
    return %arg0, %c0_i32, %arg1 : i32, i32, i32
  }
  func.func @transform_2(%arg0: i32, %arg1: i32, %arg2: i32) -> (i32, i32, i32) {
    %c0_i32 = arith.constant 0 : i32
    %c0_i32_0 = arith.constant 0 : i32
    %c0_i32_1 = arith.constant 0 : i32
    return %c0_i32, %arg2, %c0_i32_0 : i32, i32, i32
  }
  func.func @transform_3(%arg0: i32, %arg1: i32, %arg2: i32) -> (i32, i32, i32) {
    %c0_i32 = arith.constant 0 : i32
    return %arg0, %arg2, %arg1 : i32, i32, i32
  }
}

</mosaic_0001>

<llo_original>
// kernel: tpu_custom_call.1
$region0: #{tpu_custom_call.1}
  #allocation0 [shape = 'u32[]', space=smem, size = 0x4, offset = 0x4, fixed_abs, tag = 'smem constant byte address 0x4 - core index']
  #allocation1 [shape = 'u32[72,128]{1,0:T(1,128)}', space=vmem, size = 0x9000, scoped, tag = 'internal scratch']
  %s0 = inlined_call_operand.hbm [shape: f32[2,4,256], index: 0, kind: input, shape index: {}]
  %s1 = inlined_call_operand.vmem [shape: f32[2,1,256], index: 1, kind: input, shape index: {}]
  %s2 = inlined_call_operand.vmem [shape: f32[1,4,1], index: 2, kind: input, shape index: {}]
  %s3 = inlined_call_operand.hbm [shape: f32[2,4,256], index: 3, kind: output, shape index: {}]
  %s4 = sld [smem:[#allocation0]]
  $region49: #{tpu_custom_call.1} parent=0
    _
  %s6 = ssub.s32 1, %s4
  %s7 = scalar_select 0, %s6, %s4
  $region1: #{tpu_custom_call.1} parent=0
    #allocation2 [shape = 'u8[4096]{0}', space=vmem, size = 0x1000, scoped, tag = 'input window, operand 0']
    #allocation3 [shape = 's32[2]{0}', space=sflag, size = 0x8, scoped, tag = 'scoped memory for tpu_custom_call.1']
    #allocation4 [shape = 's32[2]{0}', space=sflag, size = 0x8, scoped, tag = 'scoped memory for tpu_custom_call.1']
    #allocation5 [shape = 'u8[4096]{0}', space=vmem, size = 0x1000, scoped, tag = 'output window, operand 0']
    %8 = vsyncpa [#allocation3], 0
    %s9 = scalar_lea.sflag [#allocation3], 1
    %10 = vsyncpa %s9, 0
    %11 = vsyncpa [#allocation4], 0
    %s12 = scalar_lea.sflag [#allocation4], 1
    %13 = vsyncpa %s12, 0
    loop: start=0, step=1, limit=6
    $region2: #{tpu_custom_call.1} parent=1 // loop_pre_header
      _
    $region3: #{tpu_custom_call.1} parent=1 // loop_header
      %s15 = sphi 0, %s19
      %p16 = scmp.ge.s32.totalorder %s15, 6
      %s22 = sphi 0, %s41
      %s23 = sphi 0, %s37
      %s24 = sphi 0, %s33
      %s25 = sphi 0, %s22
      %s26 = sphi 0, %s23
      %s27 = sphi 0, %s24
      %s28 = sphi 0, %s25
      %s29 = sphi 0, %s26
      %s30 = sphi 0, %s27
      %s48 = sphi 0, %s50
      %s51 = sphi 0, %s48
      %s52 = sphi 0, %s51
      %s68 = sphi 0, %s52
      %s76 = sphi 0, %s78
      %s79 = sphi 0, %s76
      %s80 = sphi 0, %s79
      %s96 = sphi 0, %s80
      %s102 = sphi 0, %s104
      %s105 = sphi 0, %s102
      %s106 = sphi 0, %s105
      %s122 = sphi 0, %s106
      %s132 = sphi 0, %s134
      %s135 = sphi 0, %s132
      %s136 = sphi 0, %s135
      %s152 = sphi 0, %s136
    $region4: #{tpu_custom_call.1} parent=1 // loop_header_branch
      %18 = sbr.rel (%p16) target = $region8
    $region5: #{tpu_custom_call.1} parent=1 // loop_body
      %s20 = ssub.s32 %s15, 1
      %s21 = ssub.s32 %s15, 2
      %s31 = sadd.s32 1, %s24
      %p32 = scmp.ge.s32.totalorder %s31, 1
      %s33 = scalar_select %p32, 0, %s31
      %s34 = sadd.s32 1, %s23
      %s35 = scalar_select %p32, %s34, %s23
      %p36 = scmp.ge.s32.totalorder %s35, 2
      %s37 = scalar_select %p36, 0, %s35
      %s38 = sadd.s32 1, %s22
      %s39 = scalar_select %p36, %s38, %s22
      %p40 = scmp.ge.s32.totalorder %s39, 2
      %s41 = scalar_select %p40, 0, %s39
      %s42 = ssub.s32 %s22, %s41
      %s43 = ssub.s32 %s24, %s33
      %s44 = sor.u32 %s42, %s43
      %s45 = ssub.s32 %s23, %s37
      %s46 = sor.u32 %s44, %s45
      %p47 = scmp.eq.s32.totalorder %s46, 0
      %s49 = sadd.s32 %s48, 1
      %s50 = scalar_select %p47, %s48, %s49
      %p53 = pneg %p47
      %p54 = scmp.eq.s32.totalorder %s15, 3
      %p55 = por %p53, %p54
      %p56 = scmp.ne.s32.totalorder %s48, %s51
      %p57 = scmp.eq.s32.totalorder %s15, 0
      %p58 = por %p56, %p57
      %p59 = scmp.ne.s32.totalorder %s48, %s51
      %p60 = scmp.eq.s32.totalorder %s20, 3
      %p61 = por %p59, %p60
      %p62 = scmp.ne.s32.totalorder %s51, %s52
      %p63 = scmp.eq.s32.totalorder %s20, 0
      %p64 = por %p62, %p63
      %p65 = scmp.ne.s32.totalorder %s51, %s52
      %p66 = scmp.eq.s32.totalorder %s21, 3
      %p67 = por %p65, %p66
      %p69 = scmp.ne.s32.totalorder %s52, %s68
      %p70 = scmp.eq.s32.totalorder %s21, 0
      %p71 = por %p69, %p70
      %s72 = ssub.s32 %s22, %s41
      %s73 = ssub.s32 %s23, %s37
      %s74 = sor.u32 %s72, %s73
      %p75 = scmp.eq.s32.totalorder %s74, 0
      %s77 = sadd.s32 %s76, 1
      %s78 = scalar_select %p75, %s76, %s77
      %p81 = pneg %p75
      %p82 = scmp.eq.s32.totalorder %s15, 3
      %p83 = por %p81, %p82
      %p84 = scmp.ne.s32.totalorder %s76, %s79
      %p85 = scmp.eq.s32.totalorder %s15, 0
      %p86 = por %p84, %p85
      %p87 = scmp.ne.s32.totalorder %s76, %s79
      %p88 = scmp.eq.s32.totalorder %s20, 3
      %p89 = por %p87, %p88
      %p90 = scmp.ne.s32.totalorder %s79, %s80
      %p91 = scmp.eq.s32.totalorder %s20, 0
      %p92 = por %p90, %p91
      %p93 = scmp.ne.s32.totalorder %s79, %s80
      %p94 = scmp.eq.s32.totalorder %s21, 3
      %p95 = por %p93, %p94
      %p97 = scmp.ne.s32.totalorder %s80, %s96
      %p98 = scmp.eq.s32.totalorder %s21, 0
      %p99 = por %p97, %p98
      %s100 = ssub.s32 %s24, %s33
      %p101 = scmp.eq.s32.totalorder %s100, 0
      %s103 = sadd.s32 %s102, 1
      %s104 = scalar_select %p101, %s102, %s103
      %p107 = pneg %p101
      %p108 = scmp.eq.s32.totalorder %s15, 3
      %p109 = por %p107, %p108
      %p110 = scmp.ne.s32.totalorder %s102, %s105
      %p111 = scmp.eq.s32.totalorder %s15, 0
      %p112 = por %p110, %p111
      %p113 = scmp.ne.s32.totalorder %s102, %s105
      %p114 = scmp.eq.s32.totalorder %s20, 3
      %p115 = por %p113, %p114
      %p116 = scmp.ne.s32.totalorder %s105, %s106
      %p117 = scmp.eq.s32.totalorder %s20, 0
      %p118 = por %p116, %p117
      %p119 = scmp.ne.s32.totalorder %s105, %s106
      %p120 = scmp.eq.s32.totalorder %s21, 3
      %p121 = por %p119, %p120
      %p123 = scmp.ne.s32.totalorder %s106, %s122
      %p124 = scmp.eq.s32.totalorder %s21, 0
      %p125 = por %p123, %p124
      %s126 = ssub.s32 %s22, %s41
      %s127 = ssub.s32 %s24, %s33
      %s128 = sor.u32 %s126, %s127
      %s129 = ssub.s32 %s23, %s37
      %s130 = sor.u32 %s128, %s129
      %p131 = scmp.eq.s32.totalorder %s130, 0
      %s133 = sadd.s32 %s132, 1
      %s134 = scalar_select %p131, %s132, %s133
      %p137 = pneg %p131
      %p138 = scmp.eq.s32.totalorder %s15, 3
      %p139 = por %p137, %p138
      %p140 = scmp.ne.s32.totalorder %s132, %s135
      %p141 = scmp.eq.s32.totalorder %s15, 0
      %p142 = por %p140, %p141
      %p143 = scmp.ne.s32.totalorder %s132, %s135
      %p144 = scmp.eq.s32.totalorder %s20, 3
      %p145 = por %p143, %p144
      %p146 = scmp.ne.s32.totalorder %s135, %s136
      %p147 = scmp.eq.s32.totalorder %s20, 0
      %p148 = por %p146, %p147
      %p149 = scmp.ne.s32.totalorder %s135, %s136
      %p150 = scmp.eq.s32.totalorder %s21, 3
      %p151 = por %p149, %p150
      %p153 = scmp.ne.s32.totalorder %s136, %s152
      %p154 = scmp.eq.s32.totalorder %s21, 0
      %p155 = por %p153, %p154
      %p156 = scmp.le.s32.totalorder 1, %s15
      %p157 = scmp.lt.s32.totalorder %s15, 5
      %p158 = pnand %p156, %p157
      %p159 = pneg %p158
      // Predicated region
      $region9: #{tpu_custom_call.1} parent=5 // pred_check
        _
      $region10: #{tpu_custom_call.1} parent=5 // pred_check_branch
        %161 = sbr.rel (%p158) target = $region12
      $region11: #{tpu_custom_call.1} parent=5 // pred_region
        %s162 = ssub.s32 %s15, 1
        // Predicated region
        $region13: #{tpu_custom_call.1} parent=11 // pred_check
          %p163 = pneg %p118
        $region14: #{tpu_custom_call.1} parent=11 // pred_check_branch
          %165 = sbr.rel (%p163) target = $region16
        $region15: #{tpu_custom_call.1} parent=11 // pred_region
          %p166 = scmp.lt.s32.totalorder %s27, 0
          %s167 = scalar_select %p166, %s27, 0
          %s168 = smul.addr %s167, 4
          %s169 = scalar_lea.vmem %s2, %s168
        $region16: #{tpu_custom_call.1} parent=11 // pred_fallthru
          _
      $region12: #{tpu_custom_call.1} parent=5 // pred_fallthru
        _
      %p170 = scmp.lt.s32.totalorder %s15, 4
      // Predicated region
      $region17: #{tpu_custom_call.1} parent=5 // pred_check
        %p171 = pneg %p170
      $region18: #{tpu_custom_call.1} parent=5 // pred_check_branch
        %173 = sbr.rel (%p171) target = $region20
      $region19: #{tpu_custom_call.1} parent=5 // pred_region
        // Predicated region
        $region21: #{tpu_custom_call.1} parent=19 // pred_check
          %p174 = pneg %p58
        $region22: #{tpu_custom_call.1} parent=19 // pred_check_branch
          %176 = sbr.rel (%p174) target = $region24
        $region23: #{tpu_custom_call.1} parent=19 // pred_region
          %s177 = sand.u32 %s48, 1
          %s178 = scalar_lea.sflag [#allocation3], %s177
          %s179 = sand.u32 %s48, 1
          %s180 = smul.addr %s179, 4
          %s181 = scalar_lea.vmem [#allocation2], %s180
          %183 = vsyncadd %s178, 0
          %s184 = smul.addr %s24, 2
          %s185 = sadd.s32 %s23, %s184
          %s186 = smul.addr %s22, 2
          %s187 = sadd.s32 %s185, %s186
          %s188 = smul.addr %s187, 4
          %s189 = scalar_lea.hbm %s0, %s188
          %s191 = sshll.u32 %s189, 4
          %s192 = int_to_ptr.hbm [resolvable:$true] %s191
          %s193 = sshll.u32 %s181, 4
          %s194 = int_to_ptr.vmem [resolvable:$true] %s193
          %196 = dma.hbm_to_vmem [thread:$0]  %s192, 64, %s194, %s178
        $region24: #{tpu_custom_call.1} parent=19 // pred_fallthru
          _
        // Predicated region
        $region25: #{tpu_custom_call.1} parent=19 // pred_check
          %p197 = pneg %p86
        $region26: #{tpu_custom_call.1} parent=19 // pred_check_branch
          %199 = sbr.rel (%p197) target = $region28
        $region27: #{tpu_custom_call.1} parent=19 // pred_region
          %p200 = scmp.lt.s32.totalorder %s22, 1
          %s201 = scalar_select %p200, %s22, 1
          %p202 = scmp.lt.s32.totalorder %s23, 1
          %s203 = scalar_select %p202, %s23, 1
          %s204 = smul.addr %s201, 2
          %s205 = sadd.s32 %s203, %s204
          %s206 = scalar_lea.vmem %s1, %s205
        $region28: #{tpu_custom_call.1} parent=19 // pred_fallthru
          _
      $region20: #{tpu_custom_call.1} parent=5 // pred_fallthru
        _
      %p207 = scmp.le.s32.totalorder 1, %s15
      %p208 = scmp.lt.s32.totalorder %s15, 5
      %p209 = pnand %p207, %p208
      %p210 = pneg %p209
      // Predicated region
      $region29: #{tpu_custom_call.1} parent=5 // pred_check
        _
      $region30: #{tpu_custom_call.1} parent=5 // pred_check_branch
        %212 = sbr.rel (%p209) target = $region32
      $region31: #{tpu_custom_call.1} parent=5 // pred_region
        %s213 = ssub.s32 %s15, 1
        %s214 = sand.u32 %s51, 1
        %s215 = scalar_lea.sflag [#allocation3], %s214
        %s216 = sand.u32 %s51, 1
        %s217 = smul.addr %s216, 4
        %s218 = scalar_lea.vmem [#allocation2], %s217
        // Predicated region
        $region33: #{tpu_custom_call.1} parent=31 // pred_check
          %p219 = pneg %p64
        $region34: #{tpu_custom_call.1} parent=31 // pred_check_branch
          %221 = sbr.rel (%p219) target = $region36
        $region35: #{tpu_custom_call.1} parent=31 // pred_region
          %223 = dma.done %s215, 64
        $region36: #{tpu_custom_call.1} parent=31 // pred_fallthru
          _
        %s224 = sand.u32 %s51, 1
        %s225 = scalar_lea.sflag [#allocation3], %s224
        %s226 = sand.u32 %s51, 1
        %s227 = smul.addr %s226, 4
        %s228 = scalar_lea.vmem [#allocation2], %s227
        %p229 = pneg %p64
        %p230 = pneg %p61
        %p231 = scmp.lt.s32.totalorder %s25, 1
        %s232 = scalar_select %p231, %s25, 1
        %p233 = scmp.lt.s32.totalorder %s26, 1
        %s234 = scalar_select %p233, %s26, 1
        %s235 = smul.addr %s232, 2
        %s236 = sadd.s32 %s234, %s235
        %s237 = scalar_lea.vmem %s1, %s236
        %p238 = pneg %p92
        %p239 = pneg %p89
        %p240 = scmp.lt.s32.totalorder %s27, 0
        %s241 = scalar_select %p240, %s27, 0
        %s242 = smul.addr %s241, 4
        %s243 = scalar_lea.vmem %s2, %s242
        %p244 = pneg %p118
        %p245 = pneg %p115
        %p246 = pneg %p148
        %p247 = pneg %p145
        %s248 = sand.u32 %s135, 1
        %s249 = scalar_lea.sflag [#allocation4], %s248
        %s250 = sand.u32 %s135, 1
        %s251 = smul.addr %s250, 4
        %s252 = scalar_lea.vmem [#allocation5], %s251
        %p253 = scmp.lt.s32.totalorder %s25, 1
        %s254 = scalar_select %p253, %s25, 1
        %p255 = scmp.lt.s32.totalorder %s26, 1
        %s256 = scalar_select %p255, %s26, 1
        %s257 = smul.addr %s254, 2
        %s258 = sadd.s32 %s256, %s257
        %s259 = scalar_lea.vmem %s1, %s258
        %p260 = scmp.lt.s32.totalorder %s27, 0
        %s261 = scalar_select %p260, %s27, 0
        %s262 = smul.addr %s261, 4
        %s263 = scalar_lea.vmem %s2, %s262
        %v264 = vld [vmem:[%s218] sm:$0xf]
        %v265 = vld [vmem:[%s263] sm:$0xf]
        %v266 = vld [vmem:[%s259] sm:$0x1]
        %268 = vset.pattern.permute.xlu0 0
        %269 = vperm.xlu0 %268, %v265
        %v270 = vpop.permute.xlu0 %269
        %v273 = vperm.slane %v266, 0
        %v275 = vmul.f32 %v270, %v273
        %v276 = vadd.f32 %v264, %v275
        %277 = vst [vmem:[%s252] sm:$0xf] %v276
        %s278 = sand.u32 %s135, 1
        %s279 = scalar_lea.sflag [#allocation4], %s278
        %s280 = sand.u32 %s135, 1
        %s281 = smul.addr %s280, 4
        %s282 = scalar_lea.vmem [#allocation5], %s281
        // Predicated region
        $region37: #{tpu_custom_call.1} parent=31 // pred_check
          %p283 = pneg %p145
        $region38: #{tpu_custom_call.1} parent=31 // pred_check_branch
          %285 = sbr.rel (%p283) target = $region40
        $region39: #{tpu_custom_call.1} parent=31 // pred_region
          %287 = vsyncadd %s279, 0
          %s288 = smul.addr %s27, 2
          %s289 = sadd.s32 %s26, %s288
          %s290 = smul.addr %s25, 2
          %s291 = sadd.s32 %s289, %s290
          %s292 = smul.addr %s291, 4
          %s293 = scalar_lea.hbm %s3, %s292
          %s295 = sshll.u32 %s282, 4
          %s296 = int_to_ptr.vmem [resolvable:$true] %s295
          %s297 = sshll.u32 %s293, 4
          %s298 = int_to_ptr.hbm [resolvable:$true] %s297
          %300 = dma.vmem_to_hbm [thread:$0]  %s296, 64, %s298, %s279
        $region40: #{tpu_custom_call.1} parent=31 // pred_fallthru
          _
      $region32: #{tpu_custom_call.1} parent=5 // pred_fallthru
        _
      %p301 = scmp.le.s32.totalorder 2, %s15
      // Predicated region
      $region41: #{tpu_custom_call.1} parent=5 // pred_check
        %p302 = pneg %p301
      $region42: #{tpu_custom_call.1} parent=5 // pred_check_branch
        %304 = sbr.rel (%p302) target = $region44
      $region43: #{tpu_custom_call.1} parent=5 // pred_region
        %s305 = ssub.s32 %s15, 2
        // Predicated region
        $region45: #{tpu_custom_call.1} parent=43 // pred_check
          %p306 = pneg %p151
        $region46: #{tpu_custom_call.1} parent=43 // pred_check_branch
          %308 = sbr.rel (%p306) target = $region48
        $region47: #{tpu_custom_call.1} parent=43 // pred_region
          %s309 = sand.u32 %s136, 1
          %s310 = scalar_lea.sflag [#allocation4], %s309
          %s311 = sand.u32 %s136, 1
          %s312 = smul.addr %s311, 4
          %s313 = scalar_lea.vmem [#allocation5], %s312
          %315 = dma.done %s310, 64
        $region48: #{tpu_custom_call.1} parent=43 // pred_fallthru
          _
      $region44: #{tpu_custom_call.1} parent=5 // pred_fallthru
        _
    $region6: #{tpu_custom_call.1} parent=1 // loop_footer
      %s19 = sadd.s32 1, %s15
    $region7: #{tpu_custom_call.1} parent=1 // loop_footer_branch
      %14 = sbr.rel target = $region3
    $region8: #{tpu_custom_call.1} parent=1 // loop_exit
      _
    %316 = vsyncpa [#allocation3], 1
    %s317 = scalar_lea.sflag [#allocation3], 1
    %318 = vsyncpa %s317, 1
    %319 = vsyncpa [#allocation4], 1
    %s320 = scalar_lea.sflag [#allocation4], 1
    %321 = vsyncpa %s320, 1

</llo_original>
